<compile_context>
chip_gen: v5e
topology: v5e:2x2
jax: 0.10.0
libtpu: 0.0.40
codegen_flags: <defaults>
</compile_context>

<pallas_src>
import numpy as np
import jax
import jax.numpy as jnp
from jax import lax
from jax.experimental import pallas as pl
from jax.experimental.pallas import tpu as pltpu


# ---------------------------------------------------------------------------
# Interpolation-matrix construction (matches torch.nn.functional.interpolate,
# mode='bicubic', align_corners=False, cubic kernel A = -0.75).
# Tiny compile-time constants, built once per (in_size, out_size).
# TODO(synk): cross-check coefficients against torch for scale<1 as well
# (cannot import torch in this sandbox; formula follows UpSampleBicubic2d).
# ---------------------------------------------------------------------------
def _bicubic_interp_matrix(in_size: int, out_size: int) -> np.ndarray:
    """Returns W of shape (out_size, in_size) with out = W @ in along one axis."""
    A = -0.75
    scale = in_size / out_size                       # align_corners=False
    out_idx = np.arange(out_size, dtype=np.float64)
    src = (out_idx + 0.5) * scale - 0.5              # half-pixel centers
    fl = np.floor(src)
    t = src - fl

    def cc1(u):  # |u| <= 1
        return ((A + 2.0) * u - (A + 3.0)) * u * u + 1.0

    def cc2(u):  # 1 < |u| < 2
        return ((A * u - 5.0 * A) * u + 8.0 * A) * u - 4.0 * A

    coeffs = [cc2(t + 1.0), cc1(t), cc1(1.0 - t), cc2(2.0 - t)]
    base = fl.astype(np.int64) - 1
    w = np.zeros((out_size, in_size), dtype=np.float64)
    rows = np.arange(out_size)
    for k in range(4):
        idx = np.clip(base + k, 0, in_size - 1)      # PyTorch clamps the taps
        np.add.at(w, (rows, idx), coeffs[k])
    return w.astype(np.float32)


# ---------------------------------------------------------------------------
# VMEM budgeting helpers (v5e / v6e / v7x friendly).
# ---------------------------------------------------------------------------
def _vmem_capacity_bytes() -> int:
    try:
        info = pltpu.get_tpu_info()
        for attr in ("vmem_capacity_bytes", "vmem_bytes", "vmem_size_bytes"):
            v = getattr(info, attr, None)
            if v:
                return int(v)
    except Exception:
        pass
    return 64 * 1024 * 1024          # conservative default: v7x per-core VMEM


def _vmem_limit_bytes() -> int:
    cap = _vmem_capacity_bytes()
    return int(min(cap * 3 // 4, 100 * 1024 * 1024))


def _step_vmem_bytes(ct, seq_in, seq_out, ph, pw, nh, nw) -> int:
    blocks = 2 * (seq_in + seq_out) * ct * 4                     # double-buffered blocks
    inter = ct * 4 * (3 * ph * pw + 2 * max(nw * ph, nh * pw) + 3 * nh * nw)
    bcast = (pw * nh * ph + nh * nw * pw) * 4                    # fallback-path weights
    return blocks + inter + bcast


def _pick_c_tile(C, seq_in, seq_out, ph, pw, nh, nw, budget) -> int:
    if C % 128 != 0:
        return C                                      # full-dim block (allowed)
    cands = sorted({c for c in (C, 512, 384, 256, 128) if c <= C and C % c == 0},
                   reverse=True)
    for ct in cands:
        if _step_vmem_bytes(ct, seq_in, seq_out, ph, pw, nh, nw) <= budget:
            return ct
    return cands[-1]


# ---------------------------------------------------------------------------
# Kernel: one (depth*batch) image, one channel tile, concat fused.
#   pe_ref : (seq_in, ct)   full pos-embed slice (cls | patches | det)
#   wh_ref : (nh, ph)       height interpolation matrix
#   ww_ref : (nw, pw)       width  interpolation matrix
#   o_ref  : (seq_out, ct)  full output slice    (cls | resized  | det)
# ---------------------------------------------------------------------------
def _make_kernel(ph, pw, nh, nw, ndet, use_fused_dot):
    npatch_in = ph * pw
    npatch_out = nh * nw

    def kernel(pe_ref, wh_ref, ww_ref, o_ref):
        # --- cls token & detection tokens: straight copy (fused concat) -----
        o_ref[0:1, :] = pe_ref[0:1, :]
        if ndet > 0:
            o_ref[1 + npatch_out:, :] = pe_ref[1 + npatch_in:, :]

        x = pe_ref[1:1 + npatch_in, :].astype(jnp.float32)        # (ph*pw, ct)
        ct = x.shape[-1]
        wh = wh_ref[...]                                          # (nh, ph)
        ww = ww_ref[...]                                          # (nw, pw)

        if use_fused_dot:
            # One big lane-dense MXU matmul per pass; no transposes/broadcasts.
            x3 = x.reshape(ph, pw, ct)
            # width pass: contract pw          -> (nw, ph, ct)
            o1 = lax.dot_general(ww, x3, (((1,), (1,)), ((), ())),
                                 preferred_element_type=jnp.float32)
            # height pass: contract ph         -> (nh, nw, ct)  (output order)
            o2 = lax.dot_general(wh, o1, (((1,), (1,)), ((), ())),
                                 preferred_element_type=jnp.float32)
            o_ref[1:1 + npatch_out, :] = o2.reshape(npatch_out, ct).astype(o_ref.dtype)
        else:
            # Fallback (proven lowering): batched small matmuls + einshape.
            x3 = jnp.concatenate(
                [x[h * pw:(h + 1) * pw][None] for h in range(ph)], axis=0)  # (ph,pw,ct)
            x_t = pltpu.einshape("hwc->whc", x3)                            # (pw,ph,ct)
            wh_b = jnp.broadcast_to(wh[None], (pw, nh, ph))
            t = lax.dot_general(wh_b, x_t, (((2,), (1,)), ((0,), (0,))),
                                preferred_element_type=jnp.float32)         # (pw,nh,ct)
            t_t = pltpu.einshape("wuc->uwc", t)                             # (nh,pw,ct)
            ww_b = jnp.broadcast_to(ww[None], (nh, nw, pw))
            o = lax.dot_general(ww_b, t_t, (((2,), (1,)), ((0,), (0,))),
                                preferred_element_type=jnp.float32)         # (nh,nw,ct)
            for u in range(nh):
                o_ref[1 + u * nw:1 + (u + 1) * nw, :] = o[u].astype(o_ref.dtype)

    return kernel


def _bicubic_concat_pallas(pe, wh, ww, *, ph, pw, nh, nw, ndet,
                           c_tile=None, use_fused=None):
    """pe: (DB, seq_in, C) -> (DB, seq_out, C) with the patch block bicubic-resized."""
    DB, seq_in, C = pe.shape
    assert seq_in == 1 + ph * pw + ndet
    seq_out = 1 + nh * nw + ndet

    if use_fused is None:
        use_fused = _fused_dot_supported()

    vmem_limit = _vmem_limit_bytes()
    if c_tile is None:
        c_tile = _pick_c_tile(C, seq_in, seq_out, ph, pw, nh, nw,
                              budget=vmem_limit * 3 // 5)
    assert C % c_tile == 0 and (c_tile == C or c_tile % 128 == 0)
    cg = C // c_tile

    kernel = _make_kernel(ph, pw, nh, nw, ndet, use_fused)

    flops = int(2 * DB * C * nw * ph * (pw + nh))
    bytes_accessed = int(4 * (DB * (seq_in + seq_out) * C + nh * ph + nw * pw))

    return pl.pallas_call(
        kernel,
        out_shape=jax.ShapeDtypeStruct((DB, seq_out, C), pe.dtype),
        grid_spec=pltpu.PrefetchScalarGridSpec(
            num_scalar_prefetch=0,
            grid=(DB, cg),
            in_specs=[
                pl.BlockSpec((None, seq_in, c_tile), lambda i, j: (i, 0, j)),
                pl.BlockSpec((nh, ph), lambda i, j: (0, 0)),
                pl.BlockSpec((nw, pw), lambda i, j: (0, 0)),
            ],
            out_specs=pl.BlockSpec((None, seq_out, c_tile), lambda i, j: (i, 0, j)),
        ),
        compiler_params=pltpu.CompilerParams(
            dimension_semantics=("parallel", "parallel"),
            vmem_limit_bytes=vmem_limit),
        cost_estimate=pl.CostEstimate(
            flops=flops, transcendentals=0, bytes_accessed=bytes_accessed),
    )(pe, wh, ww)


# ---------------------------------------------------------------------------
# One-time capability probe: run the fused (rank-3 dot_general) kernel body at
# toy size through the *real* pallas wrapper and check it against numpy.  If
# it fails to lower or mis-computes, the batched-dot fallback is used instead.
# ---------------------------------------------------------------------------
_FUSED_DOT_OK = None


def _fused_dot_supported() -> bool:
    global _FUSED_DOT_OK
    if _FUSED_DOT_OK is not None:
        return _FUSED_DOT_OK
    try:
        ph, pw, nh, nw, ndet, C = 2, 4, 3, 5, 2, 128
        seq_in = 1 + ph * pw + ndet
        pe = (jnp.arange(seq_in * C, dtype=jnp.float32) / 64.0).reshape(1, seq_in, C)
        wh = jnp.asarray(_bicubic_interp_matrix(ph, nh))
        ww = jnp.asarray(_bicubic_interp_matrix(pw, nw))
        out = _bicubic_concat_pallas(pe, wh, ww, ph=ph, pw=pw, nh=nh, nw=nw,
                                     ndet=ndet, c_tile=C, use_fused=True)
        out = np.asarray(jax.block_until_ready(out))[0]
        pe_np = np.asarray(pe, dtype=np.float64)[0]
        x3 = pe_np[1:1 + ph * pw, :].reshape(ph, pw, C)
        want = np.einsum("uh,vw,hwc->uvc",
                         np.asarray(wh, np.float64), np.asarray(ww, np.float64),
                         x3).reshape(nh * nw, C)
        ok = (np.allclose(out[0, :], pe_np[0, :], atol=1e-4)
              and np.allclose(out[1 + nh * nw:, :], pe_np[1 + ph * pw:, :], atol=1e-4)
              and np.allclose(out[1:1 + nh * nw, :], want, rtol=1e-3, atol=1e-2))
        _FUSED_DOT_OK = bool(ok)
    except Exception:
        _FUSED_DOT_OK = False
    return _FUSED_DOT_OK


# ---------------------------------------------------------------------------
# Module forward (wrapper).  Only contiguous reshapes outside the kernel.
# ---------------------------------------------------------------------------
def interpolate_mid_position_embeddings(pos_embed, *, image_size, patch_size,
                                         num_detection_tokens,
                                         img_size=(800, 1344), c_tile=None):
    depth, batch, seq_len, hidden = pos_embed.shape
    ph = image_size[0] // patch_size
    pw = image_size[1] // patch_size
    nh = img_size[0] // patch_size
    nw = img_size[1] // patch_size
    ndet = num_detection_tokens
    assert seq_len == 1 + ph * pw + ndet
    # NOTE: the PyTorch module is only well-formed for batch == 1 (its cls
    # concat relies on it); this implementation matches it exactly at batch==1.

    # Contiguous reshape only -> no HBM copies outside the kernel.
    pe = pos_embed.reshape(depth * batch, seq_len, hidden)

    wh = jnp.asarray(_bicubic_interp_matrix(ph, nh))               # (nh, ph)
    ww = jnp.asarray(_bicubic_interp_matrix(pw, nw))               # (nw, pw)

    out = _bicubic_concat_pallas(pe, wh, ww, ph=ph, pw=pw, nh=nh, nw=nw,
                                 ndet=ndet, c_tile=c_tile)
    new_seq = 1 + nh * nw + ndet
    return out.reshape(depth, batch, new_seq, hidden)


# ---------------------------------------------------------------------------
# Pure-numpy reference (mirrors the PyTorch module op-by-op).
# ---------------------------------------------------------------------------
def _np_bicubic_resize(x, out_h, out_w):
    """x: (N, C, H, W) float64; torch bicubic, align_corners=False, A=-0.75."""
    A = -0.75
    n, c, in_h, in_w = x.shape

    def taps(in_size, out_size):
        scale = in_size / out_size
        ws, idxs = [], []
        cc1 = lambda u: ((A + 2.0) * u - (A + 3.0)) * u * u + 1.0
        cc2 = lambda u: ((A * u - 5.0 * A) * u + 8.0 * A) * u - 4.0 * A
        for o in range(out_size):
            src = (o + 0.5) * scale - 0.5
            f = int(np.floor(src))
            t = src - f
            ws.append([cc2(t + 1.0), cc1(t), cc1(1.0 - t), cc2(2.0 - t)])
            idxs.append([min(max(f - 1 + k, 0), in_size - 1) for k in range(4)])
        return np.asarray(ws), np.asarray(idxs)

    wy, iy = taps(in_h, out_h)
    wx, ix = taps(in_w, out_w)
    out = np.zeros((n, c, out_h, out_w), dtype=np.float64)
    for oh in range(out_h):
        for ow in range(out_w):
            acc = np.zeros((n, c), dtype=np.float64)
            for kh in range(4):
                for kw in range(4):
                    acc += wy[oh, kh] * wx[ow, kw] * x[:, :, iy[oh, kh], ix[ow, kw]]
            out[:, :, oh, ow] = acc
    return out


def _np_reference(pos_embed, image_size, patch_size, num_detection_tokens, img_size):
    pe = np.asarray(pos_embed, dtype=np.float64)
    depth, batch, seq_len, hidden = pe.shape
    cls_pe = pe[:, :, 0, :][:, None]
    det_pe = pe[:, :, seq_len - num_detection_tokens:, :]
    patch = pe[:, :, 1:seq_len - num_detection_tokens, :]
    patch = np.transpose(patch, (0, 1, 3, 2))
    ph = image_size[0] // patch_size
    pw = image_size[1] // patch_size
    patch = patch.reshape(depth * batch, hidden, ph, pw)
    nh = img_size[0] // patch_size
    nw = img_size[1] // patch_size
    patch = _np_bicubic_resize(patch, nh, nw)
    patch = patch.reshape(depth * batch, hidden, nh * nw)
    patch = np.transpose(patch, (0, 2, 1)).reshape(depth, batch, nh * nw, hidden)
    return np.concatenate([cls_pe, patch, det_pe], axis=2)


if __name__ == "__main__":
    key = jax.random.PRNGKey(0)

    # Small config consistent with the module (batch must be 1, as in YOLOS).
    depth, batch = 3, 1
    hidden = 128
    patch_size = 16
    image_size = (64, 64)          # config.image_size -> 4x4 patch grid
    num_detection_tokens = 5
    img_size = (96, 128)           # target -> 6x8 patch grid

    ph = image_size[0] // patch_size
    pw = image_size[1] // patch_size
    nh = img_size[0] // patch_size
    nw = img_size[1] // patch_size
    seq_len = 1 + ph * pw + num_detection_tokens

    pos_embed = jax.random.normal(
        key, (depth, batch, seq_len, hidden), dtype=jnp.float32)

    out = interpolate_mid_position_embeddings(
        pos_embed,
        image_size=image_size,
        patch_size=patch_size,
        num_detection_tokens=num_detection_tokens,
        img_size=img_size,
    )
    out = jax.block_until_ready(out)

    new_seq = 1 + nh * nw + num_detection_tokens
    assert out.shape == (depth, batch, new_seq, hidden), out.shape

    ref = _np_reference(np.asarray(pos_embed), image_size, patch_size,
                        num_detection_tokens, img_size)
    np.testing.assert_allclose(np.asarray(out), ref, atol=1e-4, rtol=1e-4)

    print("KERNEL_OK")
</pallas_src>

<mosaic_0001>
module attributes {stable_mosaic.version = 11 : i64} {
  func.func @kernel(%arg0: i32, %arg1: i32, %arg2: memref<1x11x128xf32, #tpu.memory_space<vmem>>, %arg3: memref<3x2xf32, #tpu.memory_space<vmem>>, %arg4: memref<5x4xf32, #tpu.memory_space<vmem>>, %arg5: memref<1x18x128xf32, #tpu.memory_space<vmem>>) attributes {dimension_semantics = [#tpu.dimension_semantics<parallel>, #tpu.dimension_semantics<parallel>], iteration_bounds = array<i64: 1, 1>, scalar_prefetch = 0 : i64, scratch_operands = 0 : i64, tpu.core_type = #tpu.core_type<tc>, window_params = [{transform_indices = @transform_0, window_bounds = array<i64: 1, 11, 128>}, {pipeline_mode = #tpu.pipeline_mode<synchronous>, transform_indices = @transform_1, window_bounds = array<i64: 3, 2>}, {pipeline_mode = #tpu.pipeline_mode<synchronous>, transform_indices = @transform_2, window_bounds = array<i64: 5, 4>}, {transform_indices = @transform_3, window_bounds = array<i64: 1, 18, 128>}]} {
    %c0 = arith.constant 0 : index
    %c0_0 = arith.constant 0 : index
    %c0_1 = arith.constant 0 : index
    %0 = vector.load %arg2[%c0, %c0_0, %c0_1] : memref<1x11x128xf32, #tpu.memory_space<vmem>>, vector<1x1x128xf32>
    %1 = vector.shape_cast %0 : vector<1x1x128xf32> to vector<1x128xf32>
    %c0_2 = arith.constant 0 : index
    %c0_3 = arith.constant 0 : index
    %c0_4 = arith.constant 0 : index
    %2 = vector.load %arg5[%c0_2, %c0_3, %c0_4] : memref<1x18x128xf32, #tpu.memory_space<vmem>>, vector<1x1x128xf32>
    %3 = vector.shape_cast %2 : vector<1x1x128xf32> to vector<1x128xf32>
    %4 = vector.shape_cast %1 : vector<1x128xf32> to vector<1x1x128xf32>
    tpu.vector_store %arg5[%c0_2, %c0_3, %c0_4], %4 {strides = array<i32>} : memref<1x18x128xf32, #tpu.memory_space<vmem>>, vector<1x1x128xf32>,
    %c0_5 = arith.constant 0 : index
    %c9 = arith.constant 9 : index
    %c0_6 = arith.constant 0 : index
    %5 = vector.load %arg2[%c0_5, %c9, %c0_6] : memref<1x11x128xf32, #tpu.memory_space<vmem>>, vector<1x2x128xf32>
    %6 = vector.shape_cast %5 : vector<1x2x128xf32> to vector<2x128xf32>
    %c0_7 = arith.constant 0 : index
    %c16 = arith.constant 16 : index
    %c0_8 = arith.constant 0 : index
    %7 = vector.load %arg5[%c0_7, %c16, %c0_8] : memref<1x18x128xf32, #tpu.memory_space<vmem>>, vector<1x2x128xf32>
    %8 = vector.shape_cast %7 : vector<1x2x128xf32> to vector<2x128xf32>
    %9 = vector.shape_cast %6 : vector<2x128xf32> to vector<1x2x128xf32>
    tpu.vector_store %arg5[%c0_7, %c16, %c0_8], %9 {strides = array<i32>} : memref<1x18x128xf32, #tpu.memory_space<vmem>>, vector<1x2x128xf32>,
    %c0_9 = arith.constant 0 : index
    %c1 = arith.constant 1 : index
    %c0_10 = arith.constant 0 : index
    %10 = vector.load %arg2[%c0_9, %c1, %c0_10] : memref<1x11x128xf32, #tpu.memory_space<vmem>>, vector<1x8x128xf32>
    %11 = vector.shape_cast %10 : vector<1x8x128xf32> to vector<8x128xf32>
    %c0_11 = arith.constant 0 : index
    %c0_12 = arith.constant 0 : index
    %12 = vector.load %arg3[%c0_11, %c0_12] : memref<3x2xf32, #tpu.memory_space<vmem>>, vector<3x2xf32>
    %c0_13 = arith.constant 0 : index
    %c0_14 = arith.constant 0 : index
    %13 = vector.load %arg4[%c0_13, %c0_14] : memref<5x4xf32, #tpu.memory_space<vmem>>, vector<5x4xf32>
    %14 = vector.shape_cast %11 : vector<8x128xf32> to vector<2x4x128xf32>
    %cst = arith.constant dense<0.000000e+00> : vector<5x2x128xf32>
    %15 = tpu.matmul %13, %14, %cst {dimension_numbers = #tpu.dot_dimension_numbers<[1], [1], [0], [0, 2], [0, 0, 1, 0, 1, 2], [], []>} : vector<5x4xf32>, vector<2x4x128xf32>, vector<5x2x128xf32> -> vector<5x2x128xf32>
    %cst_15 = arith.constant dense<0.000000e+00> : vector<3x5x128xf32>
    %16 = tpu.matmul %12, %15, %cst_15 {dimension_numbers = #tpu.dot_dimension_numbers<[1], [1], [0], [0, 2], [0, 0, 1, 0, 1, 2], [], []>} : vector<3x2xf32>, vector<5x2x128xf32>, vector<3x5x128xf32> -> vector<3x5x128xf32>
    %17 = vector.shape_cast %16 : vector<3x5x128xf32> to vector<15x128xf32>
    %c0_16 = arith.constant 0 : index
    %c1_17 = arith.constant 1 : index
    %c0_18 = arith.constant 0 : index
    %18 = vector.load %arg5[%c0_16, %c1_17, %c0_18] : memref<1x18x128xf32, #tpu.memory_space<vmem>>, vector<1x15x128xf32>
    %19 = vector.shape_cast %18 : vector<1x15x128xf32> to vector<15x128xf32>
    %20 = vector.shape_cast %17 : vector<15x128xf32> to vector<1x15x128xf32>
    tpu.vector_store %arg5[%c0_16, %c1_17, %c0_18], %20 {strides = array<i32>} : memref<1x18x128xf32, #tpu.memory_space<vmem>>, vector<1x15x128xf32>,
    return
  }
  func.func @transform_0(%arg0: i32, %arg1: i32) -> (i32, i32, i32) {
    %c0_i32 = arith.constant 0 : i32
    %c0_i32_0 = arith.constant 0 : i32
    return %arg0, %c0_i32, %arg1 : i32, i32, i32
  }
  func.func @transform_1(%arg0: i32, %arg1: i32) -> (i32, i32) {
    %c0_i32 = arith.constant 0 : i32
    %c0_i32_0 = arith.constant 0 : i32
    %c0_i32_1 = arith.constant 0 : i32
    return %c0_i32, %c0_i32_0 : i32, i32
  }
  func.func @transform_2(%arg0: i32, %arg1: i32) -> (i32, i32) {
    %c0_i32 = arith.constant 0 : i32
    %c0_i32_0 = arith.constant 0 : i32
    %c0_i32_1 = arith.constant 0 : i32
    return %c0_i32, %c0_i32_0 : i32, i32
  }
  func.func @transform_3(%arg0: i32, %arg1: i32) -> (i32, i32, i32) {
    %c0_i32 = arith.constant 0 : i32
    %c0_i32_0 = arith.constant 0 : i32
    return %arg0, %c0_i32, %arg1 : i32, i32, i32
  }
}

module attributes {stable_mosaic.version = 11 : i64} {
  func.func @kernel(%arg0: i32, %arg1: i32, %arg2: memref<1x22x128xf32, #tpu.memory_space<vmem>>, %arg3: memref<6x4xf32, #tpu.memory_space<vmem>>, %arg4: memref<8x4xf32, #tpu.memory_space<vmem>>, %arg5: memref<1x54x128xf32, #tpu.memory_space<vmem>>) attributes {dimension_semantics = [#tpu.dimension_semantics<parallel>, #tpu.dimension_semantics<parallel>], iteration_bounds = array<i64: 3, 1>, scalar_prefetch = 0 : i64, scratch_operands = 0 : i64, tpu.core_type = #tpu.core_type<tc>, window_params = [{transform_indices = @transform_0, window_bounds = array<i64: 1, 22, 128>}, {pipeline_mode = #tpu.pipeline_mode<synchronous>, transform_indices = @transform_1, window_bounds = array<i64: 6, 4>}, {pipeline_mode = #tpu.pipeline_mode<synchronous>, transform_indices = @transform_2, window_bounds = array<i64: 8, 4>}, {transform_indices = @transform_3, window_bounds = array<i64: 1, 54, 128>}]} {
    %c0 = arith.constant 0 : index
    %c0_0 = arith.constant 0 : index
    %c0_1 = arith.constant 0 : index
    %0 = vector.load %arg2[%c0, %c0_0, %c0_1] : memref<1x22x128xf32, #tpu.memory_space<vmem>>, vector<1x1x128xf32>
    %1 = vector.shape_cast %0 : vector<1x1x128xf32> to vector<1x128xf32>
    %c0_2 = arith.constant 0 : index
    %c0_3 = arith.constant 0 : index
    %c0_4 = arith.constant 0 : index
    %2 = vector.load %arg5[%c0_2, %c0_3, %c0_4] : memref<1x54x128xf32, #tpu.memory_space<vmem>>, vector<1x1x128xf32>
    %3 = vector.shape_cast %2 : vector<1x1x128xf32> to vector<1x128xf32>
    %4 = vector.shape_cast %1 : vector<1x128xf32> to vector<1x1x128xf32>
    tpu.vector_store %arg5[%c0_2, %c0_3, %c0_4], %4 {strides = array<i32>} : memref<1x54x128xf32, #tpu.memory_space<vmem>>, vector<1x1x128xf32>,
    %c0_5 = arith.constant 0 : index
    %c17 = arith.constant 17 : index
    %c0_6 = arith.constant 0 : index
    %5 = vector.load %arg2[%c0_5, %c17, %c0_6] : memref<1x22x128xf32, #tpu.memory_space<vmem>>, vector<1x5x128xf32>
    %6 = vector.shape_cast %5 : vector<1x5x128xf32> to vector<5x128xf32>
    %c0_7 = arith.constant 0 : index
    %c49 = arith.constant 49 : index
    %c0_8 = arith.constant 0 : index
    %7 = vector.load %arg5[%c0_7, %c49, %c0_8] : memref<1x54x128xf32, #tpu.memory_space<vmem>>, vector<1x5x128xf32>
    %8 = vector.shape_cast %7 : vector<1x5x128xf32> to vector<5x128xf32>
    %9 = vector.shape_cast %6 : vector<5x128xf32> to vector<1x5x128xf32>
    tpu.vector_store %arg5[%c0_7, %c49, %c0_8], %9 {strides = array<i32>} : memref<1x54x128xf32, #tpu.memory_space<vmem>>, vector<1x5x128xf32>,
    %c0_9 = arith.constant 0 : index
    %c1 = arith.constant 1 : index
    %c0_10 = arith.constant 0 : index
    %10 = vector.load %arg2[%c0_9, %c1, %c0_10] : memref<1x22x128xf32, #tpu.memory_space<vmem>>, vector<1x16x128xf32>
    %11 = vector.shape_cast %10 : vector<1x16x128xf32> to vector<16x128xf32>
    %c0_11 = arith.constant 0 : index
    %c0_12 = arith.constant 0 : index
    %12 = vector.load %arg3[%c0_11, %c0_12] : memref<6x4xf32, #tpu.memory_space<vmem>>, vector<6x4xf32>
    %c0_13 = arith.constant 0 : index
    %c0_14 = arith.constant 0 : index
    %13 = vector.load %arg4[%c0_13, %c0_14] : memref<8x4xf32, #tpu.memory_space<vmem>>, vector<8x4xf32>
    %14 = vector.extract_strided_slice %11 {offsets = [0, 0], sizes = [4, 128], strides = [1, 1]} : vector<16x128xf32> to vector<4x128xf32>
    %15 = vector.shape_cast %14 : vector<4x128xf32> to vector<1x4x128xf32>
    %16 = vector.extract_strided_slice %11 {offsets = [4, 0], sizes = [4, 128], strides = [1, 1]} : vector<16x128xf32> to vector<4x128xf32>
    %17 = vector.shape_cast %16 : vector<4x128xf32> to vector<1x4x128xf32>
    %18 = vector.extract_strided_slice %11 {offsets = [8, 0], sizes = [4, 128], strides = [1, 1]} : vector<16x128xf32> to vector<4x128xf32>
    %19 = vector.shape_cast %18 : vector<4x128xf32> to vector<1x4x128xf32>
    %20 = vector.extract_strided_slice %11 {offsets = [12, 0], sizes = [4, 128], strides = [1, 1]} : vector<16x128xf32> to vector<4x128xf32>
    %21 = vector.shape_cast %20 : vector<4x128xf32> to vector<1x4x128xf32>
    %22 = tpu.concatenate %15, %17, %19, %21 in 0 : vector<1x4x128xf32>, vector<1x4x128xf32>, vector<1x4x128xf32>, vector<1x4x128xf32> -> vector<4x4x128xf32>
    %23 = tpu.transpose %22, [1, 0, 2] : vector<4x4x128xf32> -> vector<4x4x128xf32>
    %24 = vector.shape_cast %12 : vector<6x4xf32> to vector<1x6x4xf32>
    %25 = vector.shape_cast %24 : vector<1x6x4xf32> to vector<1x6x4xf32>
    %26 = vector.broadcast %25 : vector<1x6x4xf32> to vector<4x6x4xf32>
    %cst = arith.constant dense<0.000000e+00> : vector<4x6x128xf32>
    %27 = tpu.matmul %26, %23, %cst {dimension_numbers = #tpu.dot_dimension_numbers<[2], [1], [1], [2], [0, 0, 0, 1, 1, 2], [0], [0]>} : vector<4x6x4xf32>, vector<4x4x128xf32>, vector<4x6x128xf32> -> vector<4x6x128xf32>
    %28 = tpu.transpose %27, [1, 0, 2] : vector<4x6x128xf32> -> vector<6x4x128xf32>
    %29 = vector.shape_cast %13 : vector<8x4xf32> to vector<1x8x4xf32>
    %30 = vector.shape_cast %29 : vector<1x8x4xf32> to vector<1x8x4xf32>
    %31 = vector.broadcast %30 : vector<1x8x4xf32> to vector<6x8x4xf32>
    %cst_15 = arith.constant dense<0.000000e+00> : vector<6x8x128xf32>
    %32 = tpu.matmul %31, %28, %cst_15 {dimension_numbers = #tpu.dot_dimension_numbers<[2], [1], [1], [2], [0, 0, 0, 1, 1, 2], [0], [0]>} : vector<6x8x4xf32>, vector<6x4x128xf32>, vector<6x8x128xf32> -> vector<6x8x128xf32>
    %33 = vector.extract_strided_slice %32 {offsets = [0, 0, 0], sizes = [1, 8, 128], strides = [1, 1, 1]} : vector<6x8x128xf32> to vector<1x8x128xf32>
    %34 = vector.shape_cast %33 : vector<1x8x128xf32> to vector<8x128xf32>
    %c0_16 = arith.constant 0 : index
    %c1_17 = arith.constant 1 : index
    %c0_18 = arith.constant 0 : index
    %35 = vector.load %arg5[%c0_16, %c1_17, %c0_18] : memref<1x54x128xf32, #tpu.memory_space<vmem>>, vector<1x8x128xf32>
    %36 = vector.shape_cast %35 : vector<1x8x128xf32> to vector<8x128xf32>
    %37 = vector.shape_cast %34 : vector<8x128xf32> to vector<1x8x128xf32>
    tpu.vector_store %arg5[%c0_16, %c1_17, %c0_18], %37 {strides = array<i32>} : memref<1x54x128xf32, #tpu.memory_space<vmem>>, vector<1x8x128xf32>,
    %38 = vector.extract_strided_slice %32 {offsets = [1, 0, 0], sizes = [1, 8, 128], strides = [1, 1, 1]} : vector<6x8x128xf32> to vector<1x8x128xf32>
    %39 = vector.shape_cast %38 : vector<1x8x128xf32> to vector<8x128xf32>
    %c0_19 = arith.constant 0 : index
    %c9 = arith.constant 9 : index
    %c0_20 = arith.constant 0 : index
    %40 = vector.load %arg5[%c0_19, %c9, %c0_20] : memref<1x54x128xf32, #tpu.memory_space<vmem>>, vector<1x8x128xf32>
    %41 = vector.shape_cast %40 : vector<1x8x128xf32> to vector<8x128xf32>
    %42 = vector.shape_cast %39 : vector<8x128xf32> to vector<1x8x128xf32>
    tpu.vector_store %arg5[%c0_19, %c9, %c0_20], %42 {strides = array<i32>} : memref<1x54x128xf32, #tpu.memory_space<vmem>>, vector<1x8x128xf32>,
    %43 = vector.extract_strided_slice %32 {offsets = [2, 0, 0], sizes = [1, 8, 128], strides = [1, 1, 1]} : vector<6x8x128xf32> to vector<1x8x128xf32>
    %44 = vector.shape_cast %43 : vector<1x8x128xf32> to vector<8x128xf32>
    %c0_21 = arith.constant 0 : index
    %c17_22 = arith.constant 17 : index
    %c0_23 = arith.constant 0 : index
    %45 = vector.load %arg5[%c0_21, %c17_22, %c0_23] : memref<1x54x128xf32, #tpu.memory_space<vmem>>, vector<1x8x128xf32>
    %46 = vector.shape_cast %45 : vector<1x8x128xf32> to vector<8x128xf32>
    %47 = vector.shape_cast %44 : vector<8x128xf32> to vector<1x8x128xf32>
    tpu.vector_store %arg5[%c0_21, %c17_22, %c0_23], %47 {strides = array<i32>} : memref<1x54x128xf32, #tpu.memory_space<vmem>>, vector<1x8x128xf32>,
    %48 = vector.extract_strided_slice %32 {offsets = [3, 0, 0], sizes = [1, 8, 128], strides = [1, 1, 1]} : vector<6x8x128xf32> to vector<1x8x128xf32>
    %49 = vector.shape_cast %48 : vector<1x8x128xf32> to vector<8x128xf32>
    %c0_24 = arith.constant 0 : index
    %c25 = arith.constant 25 : index
    %c0_25 = arith.constant 0 : index
    %50 = vector.load %arg5[%c0_24, %c25, %c0_25] : memref<1x54x128xf32, #tpu.memory_space<vmem>>, vector<1x8x128xf32>
    %51 = vector.shape_cast %50 : vector<1x8x128xf32> to vector<8x128xf32>
    %52 = vector.shape_cast %49 : vector<8x128xf32> to vector<1x8x128xf32>
    tpu.vector_store %arg5[%c0_24, %c25, %c0_25], %52 {strides = array<i32>} : memref<1x54x128xf32, #tpu.memory_space<vmem>>, vector<1x8x128xf32>,
    %53 = vector.extract_strided_slice %32 {offsets = [4, 0, 0], sizes = [1, 8, 128], strides = [1, 1, 1]} : vector<6x8x128xf32> to vector<1x8x128xf32>
    %54 = vector.shape_cast %53 : vector<1x8x128xf32> to vector<8x128xf32>
    %c0_26 = arith.constant 0 : index
    %c33 = arith.constant 33 : index
    %c0_27 = arith.constant 0 : index
    %55 = vector.load %arg5[%c0_26, %c33, %c0_27] : memref<1x54x128xf32, #tpu.memory_space<vmem>>, vector<1x8x128xf32>
    %56 = vector.shape_cast %55 : vector<1x8x128xf32> to vector<8x128xf32>
    %57 = vector.shape_cast %54 : vector<8x128xf32> to vector<1x8x128xf32>
    tpu.vector_store %arg5[%c0_26, %c33, %c0_27], %57 {strides = array<i32>} : memref<1x54x128xf32, #tpu.memory_space<vmem>>, vector<1x8x128xf32>,
    %58 = vector.extract_strided_slice %32 {offsets = [5, 0, 0], sizes = [1, 8, 128], strides = [1, 1, 1]} : vector<6x8x128xf32> to vector<1x8x128xf32>
    %59 = vector.shape_cast %58 : vector<1x8x128xf32> to vector<8x128xf32>
    %c0_28 = arith.constant 0 : index
    %c41 = arith.constant 41 : index
    %c0_29 = arith.constant 0 : index
    %60 = vector.load %arg5[%c0_28, %c41, %c0_29] : memref<1x54x128xf32, #tpu.memory_space<vmem>>, vector<1x8x128xf32>
    %61 = vector.shape_cast %60 : vector<1x8x128xf32> to vector<8x128xf32>
    %62 = vector.shape_cast %59 : vector<8x128xf32> to vector<1x8x128xf32>
    tpu.vector_store %arg5[%c0_28, %c41, %c0_29], %62 {strides = array<i32>} : memref<1x54x128xf32, #tpu.memory_space<vmem>>, vector<1x8x128xf32>,
    return
  }
  func.func @transform_0(%arg0: i32, %arg1: i32) -> (i32, i32, i32) {
    %c0_i32 = arith.constant 0 : i32
    %c0_i32_0 = arith.constant 0 : i32
    return %arg0, %c0_i32, %arg1 : i32, i32, i32
  }
  func.func @transform_1(%arg0: i32, %arg1: i32) -> (i32, i32) {
    %c0_i32 = arith.constant 0 : i32
    %c0_i32_0 = arith.constant 0 : i32
    %c0_i32_1 = arith.constant 0 : i32
    return %c0_i32, %c0_i32_0 : i32, i32
  }
  func.func @transform_2(%arg0: i32, %arg1: i32) -> (i32, i32) {
    %c0_i32 = arith.constant 0 : i32
    %c0_i32_0 = arith.constant 0 : i32
    %c0_i32_1 = arith.constant 0 : i32
    return %c0_i32, %c0_i32_0 : i32, i32
  }
  func.func @transform_3(%arg0: i32, %arg1: i32) -> (i32, i32, i32) {
    %c0_i32 = arith.constant 0 : i32
    %c0_i32_0 = arith.constant 0 : i32
    return %arg0, %c0_i32, %arg1 : i32, i32, i32
  }
}

</mosaic_0001>

<llo_original>
// kernel: tpu_custom_call.1
$region0: #{tpu_custom_call.1}
  #allocation0 [shape = 'u32[]', space=smem, size = 0x4, offset = 0x4, fixed_abs, tag = 'smem constant byte address 0x4 - core index']
  #allocation1 [shape = 'u32[72,128]{1,0:T(1,128)}', space=vmem, size = 0x9000, scoped, tag = 'internal scratch']
  %s0 = inlined_call_operand.vmem [shape: f32[1,11,128], index: 0, kind: input, shape index: {}]
  %s1 = inlined_call_operand.vmem [shape: f32[3,2], index: 1, kind: input, shape index: {}]
  %s2 = inlined_call_operand.vmem [shape: f32[5,4], index: 2, kind: input, shape index: {}]
  %s3 = inlined_call_operand.vmem [shape: f32[1,18,128], index: 3, kind: output, shape index: {}]
  %s4 = sld [smem:[#allocation0]]
  $region22: #{tpu_custom_call.1} parent=0
    _
  %s6 = ssub.s32 1, %s4
  %s7 = scalar_select 0, %s6, %s4
  // Predicated region
  $region2: #{tpu_custom_call.1} parent=0 // pred_check
    _
  $region3: #{tpu_custom_call.1} parent=0 // pred_check_branch
    %9 = sbr.rel (0) target = $region5
  $region4: #{tpu_custom_call.1} parent=0 // pred_region
    _
  $region5: #{tpu_custom_call.1} parent=0 // pred_fallthru
    _
  // Predicated region
  $region6: #{tpu_custom_call.1} parent=0 // pred_check
    _
  $region7: #{tpu_custom_call.1} parent=0 // pred_check_branch
    %11 = sbr.rel (0) target = $region9
  $region8: #{tpu_custom_call.1} parent=0 // pred_region
    _
  $region9: #{tpu_custom_call.1} parent=0 // pred_fallthru
    _
  // Predicated region
  $region10: #{tpu_custom_call.1} parent=0 // pred_check
    _
  $region11: #{tpu_custom_call.1} parent=0 // pred_check_branch
    %13 = sbr.rel (0) target = $region13
  $region12: #{tpu_custom_call.1} parent=0 // pred_region
    _
  $region13: #{tpu_custom_call.1} parent=0 // pred_fallthru
    _
  %v14 = vld [vmem:[%s0] sm:$0x1]
  %15 = vst [vmem:[%s3] sm:$0x1] %v14
  %v16 = vld [vmem:[%s0 + $0x9] sm:$0x3]
  %17 = vst [vmem:[%s3 + $0x10] sm:$0x3] %v16
  %v18 = vld [vmem:[%s0 + $0x1] sm:$0xff]
  %v19 = vld [vmem:[%s1] sm:$0x7]
  %v20 = vld [vmem:[%s2] sm:$0x1f]
  %v22 = vrot.slane %v18, 4
  %v24 = vunpack.c.l.s4 1983009808
  %v25 = vunpack.c.0.s8 %v24
  %v26 = vperm.slane %v18, %v25
  %v29 = vunpack.c.l.s4 1983009808
  %v30 = vunpack.c.0.s8 %v29
  %v31 = vperm.slane %v22, %v30
  %v32 = vrot.slane %v31, 4
  %vm33 = vcmask 1047556
  %v34 = vsel %vm33, %v32, %v26
  %v35 = vrot.slane %v26, 4
  %v36 = vsel %vm33, %v31, %v35
  %v38 = vunpack.c.l.s4 1934713408
  %v39 = vunpack.c.0.s8 %v38
  %v40 = vperm.slane %v34, %v39
  %v42 = vunpack.c.l.s4 1934713408
  %v43 = vunpack.c.0.s8 %v42
  %v44 = vperm.slane %v36, %v43
  %v45 = vrot.slane %v40, 4
  %v46 = vsel %vm33, 0.0, %v45
  %v47 = vrot.slane %v44, 4
  %v48 = vsel %vm33, 0.0, %v47
  %v49 = vsel %vm33, %v47, %v40
  %v51 = vunpack.c.l.s4 1983009808
  %v52 = vunpack.c.0.s8 %v51
  %v53 = vperm.slane %v49, %v52
  %v54 = vrot.slane %v48, 4
  %v55 = vsel %vm33, %v54, %v46
  %v57 = vunpack.c.l.s4 1983009808
  %v58 = vunpack.c.0.s8 %v57
  %v59 = vperm.slane %v55, %v58
  %v60 = vrot.slane %v59, 4
  %v61 = vsel %vm33, %v60, %v53
  %v63 = vunpack.c.l.s4 1934713408
  %v64 = vunpack.c.0.s8 %v63
  %v65 = vperm.slane %v61, %v64
  %v66 = vrot.slane %v65, 4
  %v67 = vsel %vm33, 0.0, %v66
  %v68 = vsel %vm33, 0.0, 0.0
  %v70 = vunpack.c.l.s4 1983009808
  %v71 = vunpack.c.0.s8 %v70
  %v72 = vperm.slane %v68, %v71
  %v73 = vrot.slane %v72, 4
  %v74 = vsel %vm33, %v73, %v72
  %v76 = vunpack.c.l.s4 1934713408
  %v77 = vunpack.c.0.s8 %v76
  %v78 = vperm.slane %v74, %v77
  %v80 = vunpack.c.l.s4 1934713408
  %v81 = vunpack.c.0.s8 %v80
  %v82 = vperm.slane 0.0, %v81
  %v83 = vrot.slane %v82, 4
  %v84 = vsel %vm33, %v83, %v78
  %v85 = vrot.slane %v78, 4
  %v86 = vsel %vm33, %v82, %v85
  %vm87 = vcmask 31744
  %v89 = vsel %vm87, %v20, 0
  %vm91 = vcmask 1043456
  %v93 = vsel %vm91, %v65, 0
  %v96 = vsel %vm91, %v67, 0
  %98 = vmatpush.msra.mxu0 0.0
  %99 = vmatpush.msra.mxu0 0.0
  %100 = vmatpush.msra.mxu0 0.0
  %101 = vmatpush.msra.mxu0 0.0
  %102 = vmatpush.msra.mxu0 0.0
  %103 = vmatpush.msra.mxu0 0.0
  %104 = vmatpush.msra.mxu0 0.0
  %105 = vmatpush.msra.mxu0 0.0
  %106 = vmatpush.msra.mxu0 0.0
  %107 = vmatpush.msra.mxu0 0.0
  %108 = vmatpush.msra.mxu0 0.0
  %109 = vmatpush.msra.mxu0 0.0
  %110 = vmatpush.msra.mxu0 0.0
  %111 = vmatpush.msra.mxu0 0.0
  %112 = vmatpush.msra.mxu0 0.0
  %113 = vmatpush.msra.mxu0 %v93
  %114 = vmatmul.f32.gmra.mxu0 %v89
  %v115 = vpop.f32.mrf.mxu0
  %v116 = vadd.f32 %v84, %v115
  %117 = vdwg.mxu0
  %118 = vmatpush.msra.mxu0 0.0
  %119 = vmatpush.msra.mxu0 0.0
  %120 = vmatpush.msra.mxu0 0.0
  %121 = vmatpush.msra.mxu0 0.0
  %122 = vmatpush.msra.mxu0 0.0
  %123 = vmatpush.msra.mxu0 0.0
  %124 = vmatpush.msra.mxu0 0.0
  %125 = vmatpush.msra.mxu0 0.0
  %126 = vmatpush.msra.mxu0 0.0
  %127 = vmatpush.msra.mxu0 0.0
  %128 = vmatpush.msra.mxu0 0.0
  %129 = vmatpush.msra.mxu0 0.0
  %130 = vmatpush.msra.mxu0 0.0
  %131 = vmatpush.msra.mxu0 0.0
  %132 = vmatpush.msra.mxu0 0.0
  %133 = vmatpush.msra.mxu0 %v96
  %134 = vmatmul.f32.gmra.mxu0 %v89
  %v135 = vpop.f32.mrf.mxu0
  %v136 = vadd.f32 %v86, %v135
  %137 = vdwg.mxu0
  %v139 = vunpack.c.l.s4 1983009808
  %v140 = vunpack.c.0.s8 %v139
  %v141 = vperm.slane %v116, %v140
  %v142 = vrot.slane %v116, 4
  %v143 = vsel %vm33, 0.0, %v142
  %v145 = vunpack.c.l.s4 1983009808
  %v146 = vunpack.c.0.s8 %v145
  %v147 = vperm.slane %v136, %v146
  %v148 = vrot.slane %v136, 4
  %v149 = vsel %vm33, 0.0, %v148
  %v150 = vrot.slane %v147, 4
  %v151 = vsel %vm33, %v150, %v141
  %v152 = vrot.slane %v141, 4
  %v153 = vsel %vm33, %v147, %v152
  %v155 = vunpack.c.l.s4 1934713408
  %v156 = vunpack.c.0.s8 %v155
  %v157 = vperm.slane %v151, %v156
  %v159 = vunpack.c.l.s4 1934713408
  %v160 = vunpack.c.0.s8 %v159
  %v161 = vperm.slane %v153, %v160
  %v162 = vrot.slane %v149, 4
  %v163 = vsel %vm33, %v162, %v143
  %v164 = vrot.slane %v157, 4
  %v165 = vsel %vm33, 0.0, %v164
  %v166 = vrot.slane %v161, 4
  %v167 = vsel %vm33, 0.0, %v166
  %v169 = vunpack.c.l.s4 1934713408
  %v170 = vunpack.c.0.s8 %v169
  %v171 = vperm.slane %v163, %v170
  %v172 = vsel %vm33, 0.0, 0.0
  %v174 = vunpack.c.l.s4 1983009808
  %v175 = vunpack.c.0.s8 %v174
  %v176 = vperm.slane %v172, %v175
  %v178 = vunpack.c.l.s4 1983009808
  %v179 = vunpack.c.0.s8 %v178
  %v180 = vperm.slane 0.0, %v179
  %v181 = vrot.slane %v180, 4
  %v182 = vsel %vm33, %v181, %v72
  %v183 = vsel %vm33, %v180, %v73
  %v185 = vunpack.c.l.s4 1934713408
  %v186 = vunpack.c.0.s8 %v185
  %v187 = vperm.slane %v182, %v186
  %v189 = vunpack.c.l.s4 1934713408
  %v190 = vunpack.c.0.s8 %v189
  %v191 = vperm.slane %v183, %v190
  %v192 = vrot.slane %v172, 4
  %v193 = vsel %vm33, %v192, %v176
  %v194 = vrot.slane %v187, 4
  %v195 = vsel %vm33, 0.0, %v194
  %v196 = vrot.slane %v191, 4
  %v197 = vsel %vm33, 0.0, %v196
  %v199 = vunpack.c.l.s4 1934713408
  %v200 = vunpack.c.0.s8 %v199
  %v201 = vperm.slane %v193, %v200
  %vm202 = vcmask 15360
  %v204 = vsel %vm202, %v19, 0
  %vm206 = vcmask 1041408
  %v208 = vsel %vm206, %v157, 0
  %v211 = vsel %vm206, %v165, 0
  %v214 = vsel %vm206, %v161, 0
  %v217 = vsel %vm206, %v167, 0
  %v220 = vsel %vm206, %v171, 0
  %222 = vmatpush.msra.mxu0 0.0
  %223 = vmatpush.msra.mxu0 0.0
  %224 = vmatpush.msra.mxu0 0.0
  %225 = vmatpush.msra.mxu0 0.0
  %226 = vmatpush.msra.mxu0 0.0
  %227 = vmatpush.msra.mxu0 0.0
  %228 = vmatpush.msra.mxu0 0.0
  %229 = vmatpush.msra.mxu0 0.0
  %230 = vmatpush.msra.mxu0 0.0
  %231 = vmatpush.msra.mxu0 0.0
  %232 = vmatpush.msra.mxu0 0.0
  %233 = vmatpush.msra.mxu0 0.0
  %234 = vmatpush.msra.mxu0 0.0
  %235 = vmatpush.msra.mxu0 0.0
  %236 = vmatpush.msra.mxu0 0.0
  %237 = vmatpush.msra.mxu0 %v208
  %238 = vmatmul.f32.gmra.mxu0 %v204
  %v239 = vpop.f32.mrf.mxu0
  %v240 = vadd.f32 %v187, %v239
  %241 = vdwg.mxu0
  %242 = vmatpush.msra.mxu0 0.0
  %243 = vmatpush.msra.mxu0 0.0
  %244 = vmatpush.msra.mxu0 0.0
  %245 = vmatpush.msra.mxu0 0.0
  %246 = vmatpush.msra.mxu0 0.0
  %247 = vmatpush.msra.mxu0 0.0
  %248 = vmatpush.msra.mxu0 0.0
  %249 = vmatpush.msra.mxu0 0.0
  %250 = vmatpush.msra.mxu0 0.0
  %251 = vmatpush.msra.mxu0 0.0
  %252 = vmatpush.msra.mxu0 0.0
  %253 = vmatpush.msra.mxu0 0.0
  %254 = vmatpush.msra.mxu0 0.0
  %255 = vmatpush.msra.mxu0 0.0
  %256 = vmatpush.msra.mxu0 0.0
  %257 = vmatpush.msra.mxu0 %v211
  %258 = vmatmul.f32.gmra.mxu0 %v204
  %v259 = vpop.f32.mrf.mxu0
  %v260 = vadd.f32 %v195, %v259
  %261 = vdwg.mxu0
  %262 = vmatpush.msra.mxu0 0.0
  %263 = vmatpush.msra.mxu0 0.0
  %264 = vmatpush.msra.mxu0 0.0
  %265 = vmatpush.msra.mxu0 0.0
  %266 = vmatpush.msra.mxu0 0.0
  %267 = vmatpush.msra.mxu0 0.0
  %268 = vmatpush.msra.mxu0 0.0
  %269 = vmatpush.msra.mxu0 0.0
  %270 = vmatpush.msra.mxu0 0.0
  %271 = vmatpush.msra.mxu0 0.0
  %272 = vmatpush.msra.mxu0 0.0
  %273 = vmatpush.msra.mxu0 0.0
  %274 = vmatpush.msra.mxu0 0.0
  %275 = vmatpush.msra.mxu0 0.0
  %276 = vmatpush.msra.mxu0 0.0
  %277 = vmatpush.msra.mxu0 %v214
  %278 = vmatmul.f32.gmra.mxu0 %v204
  %v279 = vpop.f32.mrf.mxu0
  %v280 = vadd.f32 %v191, %v279
  %281 = vdwg.mxu0
  %282 = vmatpush.msra.mxu0 0.0
  %283 = vmatpush.msra.mxu0 0.0
  %284 = vmatpush.msra.mxu0 0.0
  %285 = vmatpush.msra.mxu0 0.0
  %286 = vmatpush.msra.mxu0 0.0
  %287 = vmatpush.msra.mxu0 0.0
  %288 = vmatpush.msra.mxu0 0.0
  %289 = vmatpush.msra.mxu0 0.0
  %290 = vmatpush.msra.mxu0 0.0
  %291 = vmatpush.msra.mxu0 0.0
  %292 = vmatpush.msra.mxu0 0.0
  %293 = vmatpush.msra.mxu0 0.0
  %294 = vmatpush.msra.mxu0 0.0
  %295 = vmatpush.msra.mxu0 0.0
  %296 = vmatpush.msra.mxu0 0.0
  %297 = vmatpush.msra.mxu0 %v217
  %298 = vmatmul.f32.gmra.mxu0 %v204
  %v299 = vpop.f32.mrf.mxu0
  %v300 = vadd.f32 %v197, %v299
  %301 = vdwg.mxu0
  %302 = vmatpush.msra.mxu0 0.0
  %303 = vmatpush.msra.mxu0 0.0
  %304 = vmatpush.msra.mxu0 0.0
  %305 = vmatpush.msra.mxu0 0.0
  %306 = vmatpush.msra.mxu0 0.0
  %307 = vmatpush.msra.mxu0 0.0
  %308 = vmatpush.msra.mxu0 0.0
  %309 = vmatpush.msra.mxu0 0.0
  %310 = vmatpush.msra.mxu0 0.0
  %311 = vmatpush.msra.mxu0 0.0
  %312 = vmatpush.msra.mxu0 0.0
  %313 = vmatpush.msra.mxu0 0.0
  %314 = vmatpush.msra.mxu0 0.0
  %315 = vmatpush.msra.mxu0 0.0
  %316 = vmatpush.msra.mxu0 0.0
  %317 = vmatpush.msra.mxu0 %v220
  %318 = vmatmul.f32.gmra.mxu0 %v204
  %v319 = vpop.f32.mrf.mxu0
  %v320 = vadd.f32 %v201, %v319
  %321 = vdwg.mxu0
  %v322 = vrot.slane %v280, 4
  %v323 = vsel %vm33, %v322, %v240
  %v325 = vunpack.c.l.s4 1983009808
  %v326 = vunpack.c.0.s8 %v325
  %v327 = vperm.slane %v323, %v326
  %v328 = vrot.slane %v300, 4
  %v329 = vsel %vm33, %v328, %v260
  %v331 = vunpack.c.l.s4 1983009808
  %v332 = vunpack.c.0.s8 %v331
  %v333 = vperm.slane %v329, %v332
  %v335 = vunpack.c.l.s4 1983009808
  %v336 = vunpack.c.0.s8 %v335
  %v337 = vperm.slane %v320, %v336
  %v338 = vrot.slane %v333, 4
  %v339 = vsel %vm33, %v338, %v327
  %v340 = vrot.slane %v327, 4
  %v341 = vsel %vm33, %v333, %v340
  %v343 = vunpack.c.l.s4 1934713408
  %v344 = vunpack.c.0.s8 %v343
  %v345 = vperm.slane %v339, %v344
  %v347 = vunpack.c.l.s4 1934713408
  %v348 = vunpack.c.0.s8 %v347
  %v349 = vperm.slane %v341, %v348
  %v351 = vunpack.c.l.s4 1934713408
  %v352 = vunpack.c.0.s8 %v351
  %v353 = vperm.slane %v337, %v352
  %v354 = vrot.slane %v337, 4
  %v355 = vsel %vm33, 0.0, %v354
  %v356 = vrot.slane %v353, 4
  %v357 = vsel %vm33, %v356, %v345
  %v358 = vrot.slane %v345, 4
  %v359 = vsel %vm33, %v353, %v358
  %v360 = vrot.slane %v355, 4
  %v361 = vsel %vm33, %v360, %v349
  %v365 = vrot.slane %v357, 1
  %v366 = vrot.slane %v357, 2
  %v367 = vrot.slane %v357, 3
  %v368 = vrot.slane %v357, 4
  %v369 = vrot.slane %v359, 1
  %v370 = vrot.slane %v359, 2
  %v371 = vrot.slane %v359, 3
  %v372 = vrot.slane %v359, 4
  %v373 = vrot.slane %v361, 1
  %v374 = vrot.slane %v361, 2
  %v375 = vrot.slane %v361, 3
  %v376 = vrot.slane %v361, 4
  %377 = vst [vmem:[#allocation1] ss:$9 sm:$0xff] %v357
  %s378 = scalar_lea.vmem [#allocation1], 1
  %379 = vst [vmem:[%s378] ss:$9 sm:$0xff] %v365
  %s380 = scalar_lea.vmem [#allocation1], 2
  %381 = vst [vmem:[%s380] ss:$9 sm:$0xff] %v366
  %s382 = scalar_lea.vmem [#allocation1], 3
  %383 = vst [vmem:[%s382] ss:$9 sm:$0xff] %v367
  %s384 = scalar_lea.vmem [#allocation1], 4
  %385 = vst [vmem:[%s384] ss:$9 sm:$0xff] %v368
  %s386 = scalar_lea.vmem [#allocation1], 5
  %387 = vst [vmem:[%s386] ss:$9 sm:$0xff] %v359
  %s388 = scalar_lea.vmem [#allocation1], 6
  %389 = vst [vmem:[%s388] ss:$9 sm:$0xff] %v369
  %s390 = scalar_lea.vmem [#allocation1], 7
  %391 = vst [vmem:[%s390] ss:$9 sm:$0xff] %v370
  %v392 = vld [vmem:[#allocation1] sm:$0xff]
  %393 = vst [vmem:[#allocation1] ss:$9 sm:$0xff] %v371
  %394 = vst [vmem:[%s378] ss:$9 sm:$0xff] %v372
  %395 = vst [vmem:[%s380] ss:$9 sm:$0xff] %v361
  %396 = vst [vmem:[%s382] ss:$9 sm:$0xff] %v373
  %397 = vst [vmem:[%s384] ss:$9 sm:$0xff] %v374
  %398 = vst [vmem:[%s386] ss:$9 sm:$0xff] %v375
  %399 = vst [vmem:[%s388] ss:$9 sm:$0xff] %v376
  %v400 = vld [vmem:[#allocation1] sm:$0xff]
  %403 = vst [vmem:[%s3 + $0x1] sm:$0xff] %v392
  %404 = vst [vmem:[%s3 + $0x9] sm:$0x7f] %v400
  // Predicated region
  $region14: #{tpu_custom_call.1} parent=0 // pred_check
    _
  $region15: #{tpu_custom_call.1} parent=0 // pred_check_branch
    %406 = sbr.rel (0) target = $region17
  $region16: #{tpu_custom_call.1} parent=0 // pred_region
    _
  $region17: #{tpu_custom_call.1} parent=0 // pred_fallthru
    _
  // Predicated region
  $region18: #{tpu_custom_call.1} parent=0 // pred_check
    _
  $region19: #{tpu_custom_call.1} parent=0 // pred_check_branch
    %408 = sbr.rel (0) target = $region21
  $region20: #{tpu_custom_call.1} parent=0 // pred_region
    _
  $region21: #{tpu_custom_call.1} parent=0 // pred_fallthru
    _

// kernel: tpu_custom_call.1
$region0: #{tpu_custom_call.1}
  #allocation0 [shape = 'u32[]', space=smem, size = 0x4, offset = 0x4, fixed_abs, tag = 'smem constant byte address 0x4 - core index']
  #allocation1 [shape = 'u32[72,128]{1,0:T(1,128)}', space=vmem, size = 0x9000, scoped, tag = 'internal scratch']
  %s0 = inlined_call_operand.hbm [shape: f32[3,22,128], index: 0, kind: input, shape index: {}]
  %s1 = inlined_call_operand.vmem [shape: f32[6,4], index: 1, kind: input, shape index: {}]
  %s2 = inlined_call_operand.vmem [shape: f32[8,4], index: 2, kind: input, shape index: {}]
  %s3 = inlined_call_operand.hbm [shape: f32[3,54,128], index: 3, kind: output, shape index: {}]
  %s4 = sld [smem:[#allocation0]]
  $region49: #{tpu_custom_call.1} parent=0
    _
  %s6 = ssub.s32 1, %s4
  %s7 = scalar_select 0, %s6, %s4
  $region1: #{tpu_custom_call.1} parent=0
    #allocation2 [shape = 'u8[24576]{0}', space=vmem, size = 0x6000, scoped, tag = 'input window, operand 0']
    #allocation3 [shape = 's32[2]{0}', space=sflag, size = 0x8, scoped, tag = 'scoped memory for tpu_custom_call.1']
    #allocation4 [shape = 's32[2]{0}', space=sflag, size = 0x8, scoped, tag = 'scoped memory for tpu_custom_call.1']
    #allocation5 [shape = 'u8[57344]{0}', space=vmem, size = 0xe000, scoped, tag = 'output window, operand 0']
    %8 = vsyncpa [#allocation3], 0
    %s9 = scalar_lea.sflag [#allocation3], 1
    %10 = vsyncpa %s9, 0
    %11 = vsyncpa [#allocation4], 0
    %s12 = scalar_lea.sflag [#allocation4], 1
    %13 = vsyncpa %s12, 0
    loop: start=0, step=1, limit=5
    $region2: #{tpu_custom_call.1} parent=1 // loop_pre_header
      _
    $region3: #{tpu_custom_call.1} parent=1 // loop_header
      %s15 = sphi 0, %s19
      %p16 = scmp.ge.s32.totalorder %s15, 5
      %s22 = sphi 0, %s34
      %s23 = sphi 0, %s30
      %s24 = sphi 0, %s22
      %s25 = sphi 0, %s23
      %s26 = sphi 0, %s24
      %s27 = sphi 0, %s25
      %s39 = sphi 0, %s41
      %s42 = sphi 0, %s39
      %s43 = sphi 0, %s42
      %s59 = sphi 0, %s43
      %s63 = sphi 0, %s63
      %s65 = sphi 0, %s63
      %s66 = sphi 0, %s65
      %s80 = sphi 0, %s66
      %s84 = sphi 0, %s84
      %s86 = sphi 0, %s84
      %s87 = sphi 0, %s86
      %s101 = sphi 0, %s87
      %s109 = sphi 0, %s111
      %s112 = sphi 0, %s109
      %s113 = sphi 0, %s112
      %s129 = sphi 0, %s113
    $region4: #{tpu_custom_call.1} parent=1 // loop_header_branch
      %18 = sbr.rel (%p16) target = $region8
    $region5: #{tpu_custom_call.1} parent=1 // loop_body
      %s20 = ssub.s32 %s15, 1
      %s21 = ssub.s32 %s15, 2
      %s28 = sadd.s32 1, %s23
      %p29 = scmp.ge.s32.totalorder %s28, 1
      %s30 = scalar_select %p29, 0, %s28
      %s31 = sadd.s32 1, %s22
      %s32 = scalar_select %p29, %s31, %s22
      %p33 = scmp.ge.s32.totalorder %s32, 3
      %s34 = scalar_select %p33, 0, %s32
      %s35 = ssub.s32 %s22, %s34
      %s36 = ssub.s32 %s23, %s30
      %s37 = sor.u32 %s35, %s36
      %p38 = scmp.eq.s32.totalorder %s37, 0
      %s40 = sadd.s32 %s39, 1
      %s41 = scalar_select %p38, %s39, %s40
      %p44 = pneg %p38
      %p45 = scmp.eq.s32.totalorder %s15, 2
      %p46 = por %p44, %p45
      %p47 = scmp.ne.s32.totalorder %s39, %s42
      %p48 = scmp.eq.s32.totalorder %s15, 0
      %p49 = por %p47, %p48
      %p50 = scmp.ne.s32.totalorder %s39, %s42
      %p51 = scmp.eq.s32.totalorder %s20, 2
      %p52 = por %p50, %p51
      %p53 = scmp.ne.s32.totalorder %s42, %s43
      %p54 = scmp.eq.s32.totalorder %s20, 0
      %p55 = por %p53, %p54
      %p56 = scmp.ne.s32.totalorder %s42, %s43
      %p57 = scmp.eq.s32.totalorder %s21, 2
      %p58 = por %p56, %p57
      %p60 = scmp.ne.s32.totalorder %s43, %s59
      %p61 = scmp.eq.s32.totalorder %s21, 0
      %p62 = por %p60, %p61
      %s64 = sadd.s32 %s63, 1
      %p67 = scmp.eq.s32.totalorder %s15, 2
      %p68 = scmp.ne.s32.totalorder %s63, %s65
      %p69 = scmp.eq.s32.totalorder %s15, 0
      %p70 = por %p68, %p69
      %p71 = scmp.ne.s32.totalorder %s63, %s65
      %p72 = scmp.eq.s32.totalorder %s20, 2
      %p73 = por %p71, %p72
      %p74 = scmp.ne.s32.totalorder %s65, %s66
      %p75 = scmp.eq.s32.totalorder %s20, 0
      %p76 = por %p74, %p75
      %p77 = scmp.ne.s32.totalorder %s65, %s66
      %p78 = scmp.eq.s32.totalorder %s21, 2
      %p79 = por %p77, %p78
      %p81 = scmp.ne.s32.totalorder %s66, %s80
      %p82 = scmp.eq.s32.totalorder %s21, 0
      %p83 = por %p81, %p82
      %s85 = sadd.s32 %s84, 1
      %p88 = scmp.eq.s32.totalorder %s15, 2
      %p89 = scmp.ne.s32.totalorder %s84, %s86
      %p90 = scmp.eq.s32.totalorder %s15, 0
      %p91 = por %p89, %p90
      %p92 = scmp.ne.s32.totalorder %s84, %s86
      %p93 = scmp.eq.s32.totalorder %s20, 2
      %p94 = por %p92, %p93
      %p95 = scmp.ne.s32.totalorder %s86, %s87
      %p96 = scmp.eq.s32.totalorder %s20, 0
      %p97 = por %p95, %p96
      %p98 = scmp.ne.s32.totalorder %s86, %s87
      %p99 = scmp.eq.s32.totalorder %s21, 2
      %p100 = por %p98, %p99
      %p102 = scmp.ne.s32.totalorder %s87, %s101
      %p103 = scmp.eq.s32.totalorder %s21, 0
      %p104 = por %p102, %p103
      %s105 = ssub.s32 %s22, %s34
      %s106 = ssub.s32 %s23, %s30
      %s107 = sor.u32 %s105, %s106
      %p108 = scmp.eq.s32.totalorder %s107, 0
      %s110 = sadd.s32 %s109, 1
      %s111 = scalar_select %p108, %s109, %s110
      %p114 = pneg %p108
      %p115 = scmp.eq.s32.totalorder %s15, 2
      %p116 = por %p114, %p115
      %p117 = scmp.ne.s32.totalorder %s109, %s112
      %p118 = scmp.eq.s32.totalorder %s15, 0
      %p119 = por %p117, %p118
      %p120 = scmp.ne.s32.totalorder %s109, %s112
      %p121 = scmp.eq.s32.totalorder %s20, 2
      %p122 = por %p120, %p121
      %p123 = scmp.ne.s32.totalorder %s112, %s113
      %p124 = scmp.eq.s32.totalorder %s20, 0
      %p125 = por %p123, %p124
      %p126 = scmp.ne.s32.totalorder %s112, %s113
      %p127 = scmp.eq.s32.totalorder %s21, 2
      %p128 = por %p126, %p127
      %p130 = scmp.ne.s32.totalorder %s113, %s129
      %p131 = scmp.eq.s32.totalorder %s21, 0
      %p132 = por %p130, %p131
      %p133 = scmp.le.s32.totalorder 1, %s15
      %p134 = scmp.lt.s32.totalorder %s15, 4
      %p135 = pnand %p133, %p134
      %p136 = pneg %p135
      // Predicated region
      $region9: #{tpu_custom_call.1} parent=5 // pred_check
        _
      $region10: #{tpu_custom_call.1} parent=5 // pred_check_branch
        %138 = sbr.rel (%p135) target = $region12
      $region11: #{tpu_custom_call.1} parent=5 // pred_region
        %s139 = ssub.s32 %s15, 1
        // Predicated region
        $region13: #{tpu_custom_call.1} parent=11 // pred_check
          %p140 = pneg %p76
        $region14: #{tpu_custom_call.1} parent=11 // pred_check_branch
          %142 = sbr.rel (%p140) target = $region16
        $region15: #{tpu_custom_call.1} parent=11 // pred_region
          _
        $region16: #{tpu_custom_call.1} parent=11 // pred_fallthru
          _
        // Predicated region
        $region17: #{tpu_custom_call.1} parent=11 // pred_check
          %p143 = pneg %p97
        $region18: #{tpu_custom_call.1} parent=11 // pred_check_branch
          %145 = sbr.rel (%p143) target = $region20
        $region19: #{tpu_custom_call.1} parent=11 // pred_region
          _
        $region20: #{tpu_custom_call.1} parent=11 // pred_fallthru
          _
      $region12: #{tpu_custom_call.1} parent=5 // pred_fallthru
        _
      %p146 = scmp.lt.s32.totalorder %s15, 3
      // Predicated region
      $region21: #{tpu_custom_call.1} parent=5 // pred_check
        %p147 = pneg %p146
      $region22: #{tpu_custom_call.1} parent=5 // pred_check_branch
        %149 = sbr.rel (%p147) target = $region24
      $region23: #{tpu_custom_call.1} parent=5 // pred_region
        // Predicated region
        $region25: #{tpu_custom_call.1} parent=23 // pred_check
          %p150 = pneg %p49
        $region26: #{tpu_custom_call.1} parent=23 // pred_check_branch
          %152 = sbr.rel (%p150) target = $region28
        $region27: #{tpu_custom_call.1} parent=23 // pred_region
          %s153 = sand.u32 %s39, 1
          %s154 = scalar_lea.sflag [#allocation3], %s153
          %s155 = sand.u32 %s39, 1
          %s156 = smul.addr %s155, 24
          %s157 = scalar_lea.vmem [#allocation2], %s156
          %159 = vsyncadd %s154, 0
          %s160 = smul.addr %s22, 3
          %s161 = sadd.s32 %s23, %s160
          %s162 = smul.addr %s161, 8
          %s163 = scalar_lea.hbm %s0, %s162
          %s164 = sshll.u32 %s163, 4
          %s165 = int_to_ptr.hbm [resolvable:$true] %s164
          %s166 = sshll.u32 %s157, 4
          %s167 = int_to_ptr.vmem [resolvable:$true] %s166
          %172 = dma.hbm_to_vmem [thread:$0]  %s165, 384, %s167, %s154, 128, 128, 8
        $region28: #{tpu_custom_call.1} parent=23 // pred_fallthru
          _
      $region24: #{tpu_custom_call.1} parent=5 // pred_fallthru
        _
      %p173 = scmp.le.s32.totalorder 1, %s15
      %p174 = scmp.lt.s32.totalorder %s15, 4
      %p175 = pnand %p173, %p174
      %p176 = pneg %p175
      // Predicated region
      $region29: #{tpu_custom_call.1} parent=5 // pred_check
        _
      $region30: #{tpu_custom_call.1} parent=5 // pred_check_branch
        %178 = sbr.rel (%p175) target = $region32
      $region31: #{tpu_custom_call.1} parent=5 // pred_region
        %s179 = ssub.s32 %s15, 1
        %s180 = sand.u32 %s42, 1
        %s181 = scalar_lea.sflag [#allocation3], %s180
        %s182 = sand.u32 %s42, 1
        %s183 = smul.addr %s182, 24
        %s184 = scalar_lea.vmem [#allocation2], %s183
        // Predicated region
        $region33: #{tpu_custom_call.1} parent=31 // pred_check
          %p185 = pneg %p55
        $region34: #{tpu_custom_call.1} parent=31 // pred_check_branch
          %187 = sbr.rel (%p185) target = $region36
        $region35: #{tpu_custom_call.1} parent=31 // pred_region
          %189 = dma.done %s181, 384
        $region36: #{tpu_custom_call.1} parent=31 // pred_fallthru
          _
        %s190 = sand.u32 %s42, 1
        %s191 = scalar_lea.sflag [#allocation3], %s190
        %s192 = sand.u32 %s42, 1
        %s193 = smul.addr %s192, 24
        %s194 = scalar_lea.vmem [#allocation2], %s193
        %p195 = pneg %p55
        %p196 = pneg %p52
        %p197 = pneg %p76
        %p198 = pneg %p73
        %p199 = pneg %p97
        %p200 = pneg %p94
        %p201 = pneg %p125
        %p202 = pneg %p122
        %s203 = sand.u32 %s112, 1
        %s204 = scalar_lea.sflag [#allocation4], %s203
        %s205 = sand.u32 %s112, 1
        %s206 = smul.addr %s205, 56
        %s207 = scalar_lea.vmem [#allocation5], %s206
        %v208 = vld [vmem:[%s184] sm:$0x1]
        %209 = vst [vmem:[%s207] sm:$0x1] %v208
        %v210 = vld [vmem:[%s184 + $0x11] sm:$0x1f]
        %211 = vst [vmem:[%s207 + $0x31] sm:$0x1f] %v210
        %v212 = vld [vmem:[%s184 + $0x1] sm:$0xff]
        %v213 = vld [vmem:[%s184 + $0x9] sm:$0xff]
        %v214 = vld [vmem:[%s1] sm:$0x3f]
        %v215 = vld [vmem:[%s2] sm:$0xff]
        %v217 = vrot.slane %v212, 4
        %v220 = vrot.slane %v213, 4
        %v222 = vrot.slane %v213, 4
        %vm223 = vcmask 1047556
        %v224 = vsel %vm223, %v222, %v212
        %v226 = vunpack.c.l.s4 1983009808
        %v227 = vunpack.c.0.s8 %v226
        %v228 = vperm.slane %v224, %v227
        %v229 = vrot.slane %v220, 4
        %v230 = vsel %vm223, %v229, %v217
        %v232 = vunpack.c.l.s4 1983009808
        %v233 = vunpack.c.0.s8 %v232
        %v234 = vperm.slane %v230, %v233
        %v235 = vrot.slane %v234, 4
        %v236 = vsel %vm223, %v235, %v228
        %v237 = vrot.slane %v228, 4
        %v238 = vsel %vm223, %v234, %v237
        %v240 = vunpack.c.l.s4 1934713408
        %v241 = vunpack.c.0.s8 %v240
        %v242 = vperm.slane %v236, %v241
        %v244 = vunpack.c.l.s4 1934713408
        %v245 = vunpack.c.0.s8 %v244
        %v246 = vperm.slane %v238, %v245
        %v247 = vrot.slane %v242, 4
        %v248 = vsel %vm223, 0.0, %v247
        %v249 = vrot.slane %v246, 4
        %v250 = vsel %vm223, 0.0, %v249
        %vm251 = vcmask 31744
        %v253 = vsel %vm251, %v214, 0
        %vm255 = vcmask 1043456
        %v257 = vsel %vm255, %v242, 0
        %259 = vmatpush.msra.mxu0 0.0
        %260 = vmatpush.msra.mxu0 0.0
        %261 = vmatpush.msra.mxu0 0.0
        %262 = vmatpush.msra.mxu0 0.0
        %263 = vmatpush.msra.mxu0 0.0
        %264 = vmatpush.msra.mxu0 0.0
        %265 = vmatpush.msra.mxu0 0.0
        %266 = vmatpush.msra.mxu0 0.0
        %267 = vmatpush.msra.mxu0 0.0
        %268 = vmatpush.msra.mxu0 0.0
        %269 = vmatpush.msra.mxu0 0.0
        %270 = vmatpush.msra.mxu0 0.0
        %271 = vmatpush.msra.mxu0 0.0
        %272 = vmatpush.msra.mxu0 0.0
        %273 = vmatpush.msra.mxu0 0.0
        %274 = vmatpush.msra.mxu0 %v257
        %275 = vmatmul.f32.gmra.mxu0 %v253
        %v276 = vpop.f32.mrf.mxu0
        %v277 = vadd.f32 0.0, %v276
        %278 = vdwg.mxu0
        %v280 = vsel %vm255, %v248, 0
        %282 = vmatpush.msra.mxu0 0.0
        %283 = vmatpush.msra.mxu0 0.0
        %284 = vmatpush.msra.mxu0 0.0
        %285 = vmatpush.msra.mxu0 0.0
        %286 = vmatpush.msra.mxu0 0.0
        %287 = vmatpush.msra.mxu0 0.0
        %288 = vmatpush.msra.mxu0 0.0
        %289 = vmatpush.msra.mxu0 0.0
        %290 = vmatpush.msra.mxu0 0.0
        %291 = vmatpush.msra.mxu0 0.0
        %292 = vmatpush.msra.mxu0 0.0
        %293 = vmatpush.msra.mxu0 0.0
        %294 = vmatpush.msra.mxu0 0.0
        %295 = vmatpush.msra.mxu0 0.0
        %296 = vmatpush.msra.mxu0 0.0
        %297 = vmatpush.msra.mxu0 %v280
        %298 = vmatmul.f32.gmra.mxu0 %v253
        %v299 = vpop.f32.mrf.mxu0
        %v300 = vadd.f32 0.0, %v299
        %301 = vdwg.mxu0
        %v303 = vsel %vm255, %v246, 0
        %305 = vmatpush.msra.mxu0 0.0
        %306 = vmatpush.msra.mxu0 0.0
        %307 = vmatpush.msra.mxu0 0.0
        %308 = vmatpush.msra.mxu0 0.0
        %309 = vmatpush.msra.mxu0 0.0
        %310 = vmatpush.msra.mxu0 0.0
        %311 = vmatpush.msra.mxu0 0.0
        %312 = vmatpush.msra.mxu0 0.0
        %313 = vmatpush.msra.mxu0 0.0
        %314 = vmatpush.msra.mxu0 0.0
        %315 = vmatpush.msra.mxu0 0.0
        %316 = vmatpush.msra.mxu0 0.0
        %317 = vmatpush.msra.mxu0 0.0
        %318 = vmatpush.msra.mxu0 0.0
        %319 = vmatpush.msra.mxu0 0.0
        %320 = vmatpush.msra.mxu0 %v303
        %321 = vmatmul.f32.gmra.mxu0 %v253
        %v322 = vpop.f32.mrf.mxu0
        %v323 = vadd.f32 0.0, %v322
        %324 = vdwg.mxu0
        %v326 = vsel %vm255, %v250, 0
        %328 = vmatpush.msra.mxu0 0.0
        %329 = vmatpush.msra.mxu0 0.0
        %330 = vmatpush.msra.mxu0 0.0
        %331 = vmatpush.msra.mxu0 0.0
        %332 = vmatpush.msra.mxu0 0.0
        %333 = vmatpush.msra.mxu0 0.0
        %334 = vmatpush.msra.mxu0 0.0
        %335 = vmatpush.msra.mxu0 0.0
        %336 = vmatpush.msra.mxu0 0.0
        %337 = vmatpush.msra.mxu0 0.0
        %338 = vmatpush.msra.mxu0 0.0
        %339 = vmatpush.msra.mxu0 0.0
        %340 = vmatpush.msra.mxu0 0.0
        %341 = vmatpush.msra.mxu0 0.0
        %342 = vmatpush.msra.mxu0 0.0
        %343 = vmatpush.msra.mxu0 %v326
        %344 = vmatmul.f32.gmra.mxu0 %v253
        %v345 = vpop.f32.mrf.mxu0
        %v346 = vadd.f32 0.0, %v345
        %347 = vdwg.mxu0
        %v348 = vrot.slane %v323, 4
        %v349 = vsel %vm223, %v348, %v277
        %v350 = vrot.slane %v277, 4
        %v351 = vsel %vm223, %v323, %v350
        %v353 = vunpack.c.l.s4 1983009808
        %v354 = vunpack.c.0.s8 %v353
        %v355 = vperm.slane %v349, %v354
        %v357 = vunpack.c.l.s4 1983009808
        %v358 = vunpack.c.0.s8 %v357
        %v359 = vperm.slane %v351, %v358
        %v360 = vrot.slane %v346, 4
        %v361 = vsel %vm223, %v360, %v300
        %v362 = vrot.slane %v300, 4
        %v363 = vsel %vm223, %v346, %v362
        %v365 = vunpack.c.l.s4 1983009808
        %v366 = vunpack.c.0.s8 %v365
        %v367 = vperm.slane %v361, %v366
        %v369 = vunpack.c.l.s4 1983009808
        %v370 = vunpack.c.0.s8 %v369
        %v371 = vperm.slane %v363, %v370
        %v372 = vrot.slane %v367, 4
        %v373 = vsel %vm223, %v372, %v355
        %v374 = vrot.slane %v355, 4
        %v375 = vsel %vm223, %v367, %v374
        %v377 = vunpack.c.l.s4 1934713408
        %v378 = vunpack.c.0.s8 %v377
        %v379 = vperm.slane %v373, %v378
        %v381 = vunpack.c.l.s4 1934713408
        %v382 = vunpack.c.0.s8 %v381
        %v383 = vperm.slane %v375, %v382
        %v384 = vrot.slane %v371, 4
        %v385 = vsel %vm223, %v384, %v359
        %v387 = vunpack.c.l.s4 1934713408
        %v388 = vunpack.c.0.s8 %v387
        %v389 = vperm.slane %v385, %v388
        %v390 = vrot.slane %v379, 4
        %v391 = vsel %vm223, 0.0, %v390
        %v392 = vrot.slane %v383, 4
        %v393 = vsel %vm223, 0.0, %v392
        %v394 = vrot.slane %v389, 4
        %v395 = vsel %vm223, 0.0, %v394
        %v397 = vsel %vm251, %v215, 0
        %v400 = vsel %vm255, %v379, 0
        %402 = vmatpush.msra.mxu0 0.0
        %403 = vmatpush.msra.mxu0 0.0
        %404 = vmatpush.msra.mxu0 0.0
        %405 = vmatpush.msra.mxu0 0.0
        %406 = vmatpush.msra.mxu0 0.0
        %407 = vmatpush.msra.mxu0 0.0
        %408 = vmatpush.msra.mxu0 0.0
        %409 = vmatpush.msra.mxu0 0.0
        %410 = vmatpush.msra.mxu0 0.0
        %411 = vmatpush.msra.mxu0 0.0
        %412 = vmatpush.msra.mxu0 0.0
        %413 = vmatpush.msra.mxu0 0.0
        %414 = vmatpush.msra.mxu0 0.0
        %415 = vmatpush.msra.mxu0 0.0
        %416 = vmatpush.msra.mxu0 0.0
        %417 = vmatpush.msra.mxu0 %v400
        %418 = vmatmul.f32.gmra.mxu0 %v397
        %v419 = vpop.f32.mrf.mxu0
        %v420 = vadd.f32 0.0, %v419
        %421 = vdwg.mxu0
        %v423 = vsel %vm255, %v391, 0
        %425 = vmatpush.msra.mxu0 0.0
        %426 = vmatpush.msra.mxu0 0.0
        %427 = vmatpush.msra.mxu0 0.0
        %428 = vmatpush.msra.mxu0 0.0
        %429 = vmatpush.msra.mxu0 0.0
        %430 = vmatpush.msra.mxu0 0.0
        %431 = vmatpush.msra.mxu0 0.0
        %432 = vmatpush.msra.mxu0 0.0
        %433 = vmatpush.msra.mxu0 0.0
        %434 = vmatpush.msra.mxu0 0.0
        %435 = vmatpush.msra.mxu0 0.0
        %436 = vmatpush.msra.mxu0 0.0
        %437 = vmatpush.msra.mxu0 0.0
        %438 = vmatpush.msra.mxu0 0.0
        %439 = vmatpush.msra.mxu0 0.0
        %440 = vmatpush.msra.mxu0 %v423
        %441 = vmatmul.f32.gmra.mxu0 %v397
        %v442 = vpop.f32.mrf.mxu0
        %v443 = vadd.f32 0.0, %v442
        %444 = vdwg.mxu0
        %v446 = vsel %vm255, %v383, 0
        %448 = vmatpush.msra.mxu0 0.0
        %449 = vmatpush.msra.mxu0 0.0
        %450 = vmatpush.msra.mxu0 0.0
        %451 = vmatpush.msra.mxu0 0.0
        %452 = vmatpush.msra.mxu0 0.0
        %453 = vmatpush.msra.mxu0 0.0
        %454 = vmatpush.msra.mxu0 0.0
        %455 = vmatpush.msra.mxu0 0.0
        %456 = vmatpush.msra.mxu0 0.0
        %457 = vmatpush.msra.mxu0 0.0
        %458 = vmatpush.msra.mxu0 0.0
        %459 = vmatpush.msra.mxu0 0.0
        %460 = vmatpush.msra.mxu0 0.0
        %461 = vmatpush.msra.mxu0 0.0
        %462 = vmatpush.msra.mxu0 0.0
        %463 = vmatpush.msra.mxu0 %v446
        %464 = vmatmul.f32.gmra.mxu0 %v397
        %v465 = vpop.f32.mrf.mxu0
        %v466 = vadd.f32 0.0, %v465
        %467 = vdwg.mxu0
        %v469 = vsel %vm255, %v393, 0
        %471 = vmatpush.msra.mxu0 0.0
        %472 = vmatpush.msra.mxu0 0.0
        %473 = vmatpush.msra.mxu0 0.0
        %474 = vmatpush.msra.mxu0 0.0
        %475 = vmatpush.msra.mxu0 0.0
        %476 = vmatpush.msra.mxu0 0.0
        %477 = vmatpush.msra.mxu0 0.0
        %478 = vmatpush.msra.mxu0 0.0
        %479 = vmatpush.msra.mxu0 0.0
        %480 = vmatpush.msra.mxu0 0.0
        %481 = vmatpush.msra.mxu0 0.0
        %482 = vmatpush.msra.mxu0 0.0
        %483 = vmatpush.msra.mxu0 0.0
        %484 = vmatpush.msra.mxu0 0.0
        %485 = vmatpush.msra.mxu0 0.0
        %486 = vmatpush.msra.mxu0 %v469
        %487 = vmatmul.f32.gmra.mxu0 %v397
        %v488 = vpop.f32.mrf.mxu0
        %v489 = vadd.f32 0.0, %v488
        %490 = vdwg.mxu0
        %v492 = vsel %vm255, %v389, 0
        %494 = vmatpush.msra.mxu0 0.0
        %495 = vmatpush.msra.mxu0 0.0
        %496 = vmatpush.msra.mxu0 0.0
        %497 = vmatpush.msra.mxu0 0.0
        %498 = vmatpush.msra.mxu0 0.0
        %499 = vmatpush.msra.mxu0 0.0
        %500 = vmatpush.msra.mxu0 0.0
        %501 = vmatpush.msra.mxu0 0.0
        %502 = vmatpush.msra.mxu0 0.0
        %503 = vmatpush.msra.mxu0 0.0
        %504 = vmatpush.msra.mxu0 0.0
        %505 = vmatpush.msra.mxu0 0.0
        %506 = vmatpush.msra.mxu0 0.0
        %507 = vmatpush.msra.mxu0 0.0
        %508 = vmatpush.msra.mxu0 0.0
        %509 = vmatpush.msra.mxu0 %v492
        %510 = vmatmul.f32.gmra.mxu0 %v397
        %v511 = vpop.f32.mrf.mxu0
        %v512 = vadd.f32 0.0, %v511
        %513 = vdwg.mxu0
        %v515 = vsel %vm255, %v395, 0
        %517 = vmatpush.msra.mxu0 0.0
        %518 = vmatpush.msra.mxu0 0.0
        %519 = vmatpush.msra.mxu0 0.0
        %520 = vmatpush.msra.mxu0 0.0
        %521 = vmatpush.msra.mxu0 0.0
        %522 = vmatpush.msra.mxu0 0.0
        %523 = vmatpush.msra.mxu0 0.0
        %524 = vmatpush.msra.mxu0 0.0
        %525 = vmatpush.msra.mxu0 0.0
        %526 = vmatpush.msra.mxu0 0.0
        %527 = vmatpush.msra.mxu0 0.0
        %528 = vmatpush.msra.mxu0 0.0
        %529 = vmatpush.msra.mxu0 0.0
        %530 = vmatpush.msra.mxu0 0.0
        %531 = vmatpush.msra.mxu0 0.0
        %532 = vmatpush.msra.mxu0 %v515
        %533 = vmatmul.f32.gmra.mxu0 %v397
        %v534 = vpop.f32.mrf.mxu0
        %v535 = vadd.f32 0.0, %v534
        %536 = vdwg.mxu0
        %537 = vst [vmem:[%s207 + $0x1] sm:$0xff] %v420
        %538 = vst [vmem:[%s207 + $0x9] sm:$0xff] %v443
        %539 = vst [vmem:[%s207 + $0x11] sm:$0xff] %v466
        %540 = vst [vmem:[%s207 + $0x19] sm:$0xff] %v489
        %541 = vst [vmem:[%s207 + $0x21] sm:$0xff] %v512
        %542 = vst [vmem:[%s207 + $0x29] sm:$0xff] %v535
        %s543 = sand.u32 %s112, 1
        %s544 = scalar_lea.sflag [#allocation4], %s543
        %s545 = sand.u32 %s112, 1
        %s546 = smul.addr %s545, 56
        %s547 = scalar_lea.vmem [#allocation5], %s546
        // Predicated region
        $region37: #{tpu_custom_call.1} parent=31 // pred_check
          %p548 = pneg %p122
        $region38: #{tpu_custom_call.1} parent=31 // pred_check_branch
          %550 = sbr.rel (%p548) target = $region40
        $region39: #{tpu_custom_call.1} parent=31 // pred_region
          %552 = vsyncadd %s544, 0
          %s553 = smul.addr %s24, 7
          %s554 = sadd.s32 %s25, %s553
          %s555 = smul.addr %s554, 8
          %s556 = scalar_lea.hbm %s3, %s555
          %s557 = sshll.u32 %s547, 4
          %s558 = int_to_ptr.vmem [resolvable:$true] %s557
          %s559 = sshll.u32 %s556, 4
          %s560 = int_to_ptr.hbm [resolvable:$true] %s559
          %565 = dma.vmem_to_hbm [thread:$0]  %s558, 896, %s560, %s544, 128, 128, 8
        $region40: #{tpu_custom_call.1} parent=31 // pred_fallthru
          _
      $region32: #{tpu_custom_call.1} parent=5 // pred_fallthru
        _
      %p566 = scmp.le.s32.totalorder 2, %s15
      // Predicated region
      $region41: #{tpu_custom_call.1} parent=5 // pred_check
        %p567 = pneg %p566
      $region42: #{tpu_custom_call.1} parent=5 // pred_check_branch
        %569 = sbr.rel (%p567) target = $region44
      $region43: #{tpu_custom_call.1} parent=5 // pred_region
        %s570 = ssub.s32 %s15, 2
        // Predicated region
        $region45: #{tpu_custom_call.1} parent=43 // pred_check
          %p571 = pneg %p128
        $region46: #{tpu_custom_call.1} parent=43 // pred_check_branch
          %573 = sbr.rel (%p571) target = $region48
        $region47: #{tpu_custom_call.1} parent=43 // pred_region
          %s574 = sand.u32 %s113, 1
          %s575 = scalar_lea.sflag [#allocation4], %s574
          %s576 = sand.u32 %s113, 1
          %s577 = smul.addr %s576, 56
          %s578 = scalar_lea.vmem [#allocation5], %s577
          %580 = dma.done %s575, 896
        $region48: #{tpu_custom_call.1} parent=43 // pred_fallthru
          _
      $region44: #{tpu_custom_call.1} parent=5 // pred_fallthru
        _
    $region6: #{tpu_custom_call.1} parent=1 // loop_footer
      %s19 = sadd.s32 1, %s15
    $region7: #{tpu_custom_call.1} parent=1 // loop_footer_branch
      %14 = sbr.rel target = $region3
    $region8: #{tpu_custom_call.1} parent=1 // loop_exit
      _
    %581 = vsyncpa [#allocation3], 1
    %s582 = scalar_lea.sflag [#allocation3], 1
    %583 = vsyncpa %s582, 1
    %584 = vsyncpa [#allocation4], 1
    %s585 = scalar_lea.sflag [#allocation4], 1
    %586 = vsyncpa %s585, 1

</llo_original>
